<compile_context>
chip_gen: v7x
topology: tpu7x:2x2x1
jax: 0.10.0
libtpu: 0.0.40
codegen_flags: <defaults>
</compile_context>

<pallas_src>
import jax
import jax.numpy as jnp
from jax.experimental import pallas as pl
from jax.experimental.pallas import tpu as pltpu

_SMOOTH = 1.0
_LANES = 128
_SUB = 8
_MAX_BLOCK_ROWS = 2048  # 1 MiB per f32 input block; fine on v5e/v6e/v7x.


def _round_up(x, m):
    return ((x + m - 1) // m) * m


def _make_dice_kernel(block_rows, valid_rows, need_row_mask):
    groups = block_rows // _SUB

    def kernel(pred_ref, true_ref, inter_ref, sum_ref):
        @pl.when(pl.program_id(0) == 0)
        def _init():
            inter_ref[...] = jnp.zeros_like(inter_ref)
            sum_ref[...] = jnp.zeros_like(sum_ref)

        p = pred_ref[...].astype(jnp.float32)
        t = true_ref[...].astype(jnp.float32)

        if need_row_mask:
            # Rows past `valid_rows` belong to the padded partial block and
            # hold unspecified data -> zero them out before accumulating.
            row_idx = jax.lax.broadcasted_iota(
                jnp.int32, (block_rows, _LANES), 0)
            global_row = pl.program_id(0) * block_rows + row_idx
            valid = global_row < valid_rows
            p = jnp.where(valid, p, 0.0)
            t = jnp.where(valid, t, 0.0)

        # Reduce (block_rows, 128) -> (8, 128) with vreg+vreg VPU adds only;
        # the cross-lane/sublane reduction to scalars happens in the wrapper.
        inter_ref[...] += jnp.sum(
            (p * t).reshape(groups, _SUB, _LANES), axis=0)
        sum_ref[...] += jnp.sum(
            (p + t).reshape(groups, _SUB, _LANES), axis=0)

    return kernel


def dice_loss(y_pred, y_true):
    assert y_pred.shape == y_true.shape

    # Keep floating dtypes as-is (cast in-kernel is free on the VPU); only
    # non-float masks (bool/int) get promoted here.
    if not jnp.issubdtype(y_pred.dtype, jnp.floating):
        y_pred = y_pred.astype(jnp.float32)
    if not jnp.issubdtype(y_true.dtype, jnp.floating):
        y_true = y_true.astype(jnp.float32)

    pred_flat = y_pred.reshape(-1)
    true_flat = y_true.reshape(-1)
    n = pred_flat.shape[0]

    # Pad the lane dimension to a multiple of 128 only if needed (zeros are
    # neutral for all three sums).
    lane_pad = (-n) % _LANES
    if lane_pad:
        pred_flat = jnp.pad(pred_flat, (0, lane_pad))
        true_flat = jnp.pad(true_flat, (0, lane_pad))

    rows = (n + lane_pad) // _LANES
    pred2d = pred_flat.reshape(rows, _LANES)
    true2d = true_flat.reshape(rows, _LANES)

    block_rows = min(_MAX_BLOCK_ROWS, _round_up(rows, _SUB))
    num_blocks = pl.cdiv(rows, block_rows)
    need_row_mask = (num_blocks * block_rows) != rows

    kernel = _make_dice_kernel(block_rows, rows, need_row_mask)

    acc_shape = jax.ShapeDtypeStruct((_SUB, _LANES), jnp.float32)
    acc_spec = pl.BlockSpec((_SUB, _LANES), lambda i: (0, 0))

    inter_acc, sum_acc = pl.pallas_call(
        kernel,
        out_shape=(acc_shape, acc_shape),
        grid_spec=pltpu.PrefetchScalarGridSpec(
            num_scalar_prefetch=0,
            grid=(num_blocks,),
            in_specs=[
                pl.BlockSpec((block_rows, _LANES), lambda i: (i, 0)),
                pl.BlockSpec((block_rows, _LANES), lambda i: (i, 0)),
            ],
            out_specs=(acc_spec, acc_spec),
        ),
        compiler_params=pltpu.CompilerParams(
            dimension_semantics=("arbitrary",)),
    )(pred2d, true2d)

    # TODO(synk): on v7x the reduction could additionally be sharded across
    # the two TensorCores (core-parallel leading grid axis + per-core partial
    # outputs) for up to ~2x; single-TC grid kept here for simplicity.
    inter = jnp.sum(inter_acc)
    union = jnp.sum(sum_acc)
    dsc = (2.0 * inter + _SMOOTH) / (union + _SMOOTH)
    return 1.0 - dsc


def _dice_loss_ref(y_pred, y_true):
    p = y_pred.reshape(-1).astype(jnp.float32)
    t = y_true.reshape(-1).astype(jnp.float32)
    inter = jnp.sum(p * t)
    union = jnp.sum(p) + jnp.sum(t)
    dsc = (2.0 * inter + _SMOOTH) / (union + _SMOOTH)
    return 1.0 - dsc


if __name__ == "__main__":
    key = jax.random.PRNGKey(0)
    k1, k2 = jax.random.split(key)

    # NCHW prediction / target masks, same size (matches the module's assert).
    y_pred = jax.random.uniform(k1, (2, 4, 16, 16), dtype=jnp.float32)
    y_true = (jax.random.uniform(k2, (2, 4, 16, 16)) > 0.5).astype(jnp.float32)

    result = jax.block_until_ready(dice_loss(y_pred, y_true))
    expected = _dice_loss_ref(y_pred, y_true)
    assert jnp.allclose(result, expected, rtol=1e-5, atol=1e-6), (
        result, expected)

    # Ragged size -> exercises lane padding + in-kernel row mask.
    k3, k4 = jax.random.split(k1)
    yp2 = jax.random.uniform(k3, (3, 5, 7), dtype=jnp.float32)
    yt2 = (jax.random.uniform(k4, (3, 5, 7)) > 0.5).astype(jnp.float32)
    r2 = jax.block_until_ready(dice_loss(yp2, yt2))
    e2 = _dice_loss_ref(yp2, yt2)
    assert jnp.allclose(r2, e2, rtol=1e-5, atol=1e-6), (r2, e2)

    print("KERNEL_OK")
</pallas_src>

<mosaic_0001>
module attributes {stable_mosaic.version = 11 : i64} {
  func.func @kernel(%arg0: i32, %arg1: memref<16x128xf32, #tpu.memory_space<vmem>>, %arg2: memref<16x128xf32, #tpu.memory_space<vmem>>, %arg3: memref<8x128xf32, #tpu.memory_space<vmem>>, %arg4: memref<8x128xf32, #tpu.memory_space<vmem>>) attributes {dimension_semantics = [#tpu.dimension_semantics<arbitrary>], iteration_bounds = array<i64: 1>, scalar_prefetch = 0 : i64, scratch_operands = 0 : i64, tpu.core_type = #tpu.core_type<tc>, window_params = [{transform_indices = @transform_0, window_bounds = array<i64: 16, 128>}, {transform_indices = @transform_1, window_bounds = array<i64: 16, 128>}, {pipeline_mode = #tpu.pipeline_mode<synchronous>, transform_indices = @transform_2, window_bounds = array<i64: 8, 128>}, {pipeline_mode = #tpu.pipeline_mode<synchronous>, transform_indices = @transform_3, window_bounds = array<i64: 8, 128>}]} {
    %c0_i32 = arith.constant 0 : i32
    %0 = arith.cmpi eq, %arg0, %c0_i32 : i32
    %1 = arith.extui %0 : i1 to i32
    %c0_i32_0 = arith.constant 0 : i32
    %2 = arith.cmpi ne, %1, %c0_i32_0 : i32
    scf.if %2 {
      %cst_13 = arith.constant 0.000000e+00 : f32
      %17 = vector.broadcast %cst_13 : f32 to vector<8x128xf32>
      %c0_14 = arith.constant 0 : index
      %c0_15 = arith.constant 0 : index
      %18 = vector.load %arg3[%c0_14, %c0_15] : memref<8x128xf32, #tpu.memory_space<vmem>>, vector<8x128xf32>
      tpu.vector_store %arg3[%c0_14, %c0_15], %17 {strides = array<i32>} : memref<8x128xf32, #tpu.memory_space<vmem>>, vector<8x128xf32>,
      %cst_16 = arith.constant 0.000000e+00 : f32
      %19 = vector.broadcast %cst_16 : f32 to vector<8x128xf32>
      %c0_17 = arith.constant 0 : index
      %c0_18 = arith.constant 0 : index
      %20 = vector.load %arg4[%c0_17, %c0_18] : memref<8x128xf32, #tpu.memory_space<vmem>>, vector<8x128xf32>
      tpu.vector_store %arg4[%c0_17, %c0_18], %19 {strides = array<i32>} : memref<8x128xf32, #tpu.memory_space<vmem>>, vector<8x128xf32>,
    } else {
    }
    %c0 = arith.constant 0 : index
    %c0_1 = arith.constant 0 : index
    %3 = vector.load %arg1[%c0, %c0_1] : memref<16x128xf32, #tpu.memory_space<vmem>>, vector<16x128xf32>
    %c0_2 = arith.constant 0 : index
    %c0_3 = arith.constant 0 : index
    %4 = vector.load %arg2[%c0_2, %c0_3] : memref<16x128xf32, #tpu.memory_space<vmem>>, vector<16x128xf32>
    %c0_4 = arith.constant 0 : index
    %c0_5 = arith.constant 0 : index
    %5 = vector.load %arg3[%c0_4, %c0_5] : memref<8x128xf32, #tpu.memory_space<vmem>>, vector<8x128xf32>
    %6 = arith.mulf %3, %4 : vector<16x128xf32>
    %7 = vector.shape_cast %6 : vector<16x128xf32> to vector<2x8x128xf32>
    %cst = arith.constant dense<0.000000e+00> : vector<8x128xf32>
    %8 = vector.multi_reduction <add>, %7, %cst [0] : vector<2x8x128xf32> to vector<8x128xf32>
    %9 = arith.addf %5, %8 : vector<8x128xf32>
    %c0_6 = arith.constant 0 : index
    %c0_7 = arith.constant 0 : index
    %10 = vector.load %arg3[%c0_6, %c0_7] : memref<8x128xf32, #tpu.memory_space<vmem>>, vector<8x128xf32>
    tpu.vector_store %arg3[%c0_6, %c0_7], %9 {strides = array<i32>} : memref<8x128xf32, #tpu.memory_space<vmem>>, vector<8x128xf32>,
    %c0_8 = arith.constant 0 : index
    %c0_9 = arith.constant 0 : index
    %11 = vector.load %arg4[%c0_8, %c0_9] : memref<8x128xf32, #tpu.memory_space<vmem>>, vector<8x128xf32>
    %12 = arith.addf %3, %4 : vector<16x128xf32>
    %13 = vector.shape_cast %12 : vector<16x128xf32> to vector<2x8x128xf32>
    %cst_10 = arith.constant dense<0.000000e+00> : vector<8x128xf32>
    %14 = vector.multi_reduction <add>, %13, %cst_10 [0] : vector<2x8x128xf32> to vector<8x128xf32>
    %15 = arith.addf %11, %14 : vector<8x128xf32>
    %c0_11 = arith.constant 0 : index
    %c0_12 = arith.constant 0 : index
    %16 = vector.load %arg4[%c0_11, %c0_12] : memref<8x128xf32, #tpu.memory_space<vmem>>, vector<8x128xf32>
    tpu.vector_store %arg4[%c0_11, %c0_12], %15 {strides = array<i32>} : memref<8x128xf32, #tpu.memory_space<vmem>>, vector<8x128xf32>,
    return
  }
  func.func @transform_0(%arg0: i32) -> (i32, i32) {
    %c0_i32 = arith.constant 0 : i32
    %c0_i32_0 = arith.constant 0 : i32
    return %arg0, %c0_i32 : i32, i32
  }
  func.func @transform_1(%arg0: i32) -> (i32, i32) {
    %c0_i32 = arith.constant 0 : i32
    %c0_i32_0 = arith.constant 0 : i32
    return %arg0, %c0_i32 : i32, i32
  }
  func.func @transform_2(%arg0: i32) -> (i32, i32) {
    %c0_i32 = arith.constant 0 : i32
    %c0_i32_0 = arith.constant 0 : i32
    %c0_i32_1 = arith.constant 0 : i32
    return %c0_i32, %c0_i32_0 : i32, i32
  }
  func.func @transform_3(%arg0: i32) -> (i32, i32) {
    %c0_i32 = arith.constant 0 : i32
    %c0_i32_0 = arith.constant 0 : i32
    %c0_i32_1 = arith.constant 0 : i32
    return %c0_i32, %c0_i32_0 : i32, i32
  }
}

</mosaic_0001>

<llo_original>
// kernel: tpu_custom_call.1
$region0: #{tpu_custom_call.1}
  #allocation0 [shape = 'u32[]', space=smem, size = 0x4, offset = 0x4, fixed_abs, tag = 'smem constant byte address 0x4 - core index']
  #allocation1 [shape = 'u32[144,128]{1,0:T(1,128)}', space=vmem, size = 0x12000, scoped, tag = 'internal scratch']
  %s0 = inlined_call_operand.hbm [shape: f32[16,128], index: 0, kind: input, shape index: {}]
  %s1 = inlined_call_operand.hbm [shape: f32[16,128], index: 1, kind: input, shape index: {}]
  %s2 = inlined_call_operand.hbm [shape: f32[8,128], index: 2, kind: output, shape index: {0}]
  %s3 = inlined_call_operand.hbm [shape: f32[8,128], index: 3, kind: output, shape index: {1}]
  %4 = xla_tuple %s2, %s3
  %s5 = sld [smem:[#allocation0]]
  $region38: #{tpu_custom_call.1} parent=0
    _
  %s7 = ssub.s32 1, %s5
  %s8 = scalar_select 0, %s7, %s5
  $region1: #{tpu_custom_call.1} parent=0
    #allocation2 [shape = 'u8[8192]{0}', space=vmem, size = 0x2000, scoped, tag = 'input window, operand 0, single buffered']
    #allocation3 [shape = 's32[1]{0}', space=sflag, size = 0x4, scoped, tag = 'scoped memory for tpu_custom_call.1']
    #allocation4 [shape = 's32[1]{0}', space=sflag, size = 0x4, scoped, tag = 'scoped memory for tpu_custom_call.1']
    #allocation5 [shape = 'u8[8192]{0}', space=vmem, size = 0x2000, scoped, tag = 'input window, operand 1, single buffered']
    #allocation6 [shape = 's32[1]{0}', space=sflag, size = 0x4, scoped, tag = 'scoped memory for tpu_custom_call.1']
    #allocation7 [shape = 'u8[4096]{0}', space=vmem, size = 0x1000, scoped, tag = 'output window, operand 0, single buffered']
    #allocation8 [shape = 'u8[4096]{0}', space=vmem, size = 0x1000, scoped, tag = 'output window, operand 1, single buffered']
    #allocation9 [shape = 's32[1]{0}', space=sflag, size = 0x4, scoped, tag = 'scoped memory for tpu_custom_call.1']
    %9 = vsyncpa [#allocation3], 0
    %10 = vsyncpa [#allocation6], 0
    %11 = vsyncpa [#allocation4], 0
    %12 = vsyncpa [#allocation9], 0
    // Predicated region
    $region2: #{tpu_custom_call.1} parent=1 // pred_check
      _
    $region3: #{tpu_custom_call.1} parent=1 // pred_check_branch
      %14 = sbr.rel (0) target = $region5
    $region4: #{tpu_custom_call.1} parent=1 // pred_region
      %s16 = ssub.s32 256, 256
      %17 = vsyncadd [#allocation3], %s16
      %s18 = sshll.u32 [#allocation2], 4
      %s19 = int_to_ptr.vmem [resolvable:$true] %s18
      %24 = dma.hbm_to_vmem [thread:$0]  %s0, 256, %s19, [#allocation3], 128, 128, 8
    $region5: #{tpu_custom_call.1} parent=1 // pred_fallthru
      _
    // Predicated region
    $region6: #{tpu_custom_call.1} parent=1 // pred_check
      _
    $region7: #{tpu_custom_call.1} parent=1 // pred_check_branch
      %26 = sbr.rel (0) target = $region9
    $region8: #{tpu_custom_call.1} parent=1 // pred_region
      %s28 = ssub.s32 256, 256
      %29 = vsyncadd [#allocation6], %s28
      %s30 = sshll.u32 [#allocation5], 4
      %s31 = int_to_ptr.vmem [resolvable:$true] %s30
      %36 = dma.hbm_to_vmem [thread:$0]  %s1, 256, %s31, [#allocation6], 128, 128, 8
    $region9: #{tpu_custom_call.1} parent=1 // pred_fallthru
      _
    // Predicated region
    $region10: #{tpu_custom_call.1} parent=1 // pred_check
      _
    $region11: #{tpu_custom_call.1} parent=1 // pred_check_branch
      %38 = sbr.rel (0) target = $region13
    $region12: #{tpu_custom_call.1} parent=1 // pred_region
      %39 = dma.done [#allocation3], 256
    $region13: #{tpu_custom_call.1} parent=1 // pred_fallthru
      _
    // Predicated region
    $region14: #{tpu_custom_call.1} parent=1 // pred_check
      _
    $region15: #{tpu_custom_call.1} parent=1 // pred_check_branch
      %41 = sbr.rel (0) target = $region17
    $region16: #{tpu_custom_call.1} parent=1 // pred_region
      %42 = dma.done [#allocation6], 256
    $region17: #{tpu_custom_call.1} parent=1 // pred_fallthru
      _
    %p43 = scmp.eq.s32.totalorder 0, 0
    // Predicated region
    $region18: #{tpu_custom_call.1} parent=1 // pred_check
      %p44 = pneg %p43
    $region19: #{tpu_custom_call.1} parent=1 // pred_check_branch
      %46 = sbr.rel (%p44) target = $region21
    $region20: #{tpu_custom_call.1} parent=1 // pred_region
      %47 = vst [vmem:[#allocation7] sm:$0xff] 0.0
      %48 = vst [vmem:[#allocation8] sm:$0xff] 0.0
    $region21: #{tpu_custom_call.1} parent=1 // pred_fallthru
      _
    %v49 = vld [vmem:[#allocation2] sm:$0xff]
    %v50 = vld [vmem:[#allocation2 + $0x8] sm:$0xff]
    %v51 = vld [vmem:[#allocation5] sm:$0xff]
    %v52 = vld [vmem:[#allocation5 + $0x8] sm:$0xff]
    %v53 = vld [vmem:[#allocation7] sm:$0xff]
    %v54 = vmul.f32 %v49, %v51
    %v55 = vmul.f32 %v50, %v52
    %v56 = vadd.f32 %v54, %v55
    %v57 = vadd.f32 %v53, %v56
    %58 = vst [vmem:[#allocation7] sm:$0xff] %v57
    %v59 = vld [vmem:[#allocation8] sm:$0xff]
    %v60 = vadd.f32 %v49, %v51
    %v61 = vadd.f32 %v50, %v52
    %v62 = vadd.f32 %v60, %v61
    %v63 = vadd.f32 %v59, %v62
    %64 = vst [vmem:[#allocation8] sm:$0xff] %v63
    // Predicated region
    $region22: #{tpu_custom_call.1} parent=1 // pred_check
      _
    $region23: #{tpu_custom_call.1} parent=1 // pred_check_branch
      %66 = sbr.rel (0) target = $region25
    $region24: #{tpu_custom_call.1} parent=1 // pred_region
      %s68 = ssub.s32 128, 128
      %69 = vsyncadd [#allocation4], %s68
      %s71 = sshll.u32 [#allocation7], 4
      %s72 = int_to_ptr.vmem [resolvable:$true] %s71
      %74 = dma.vmem_to_hbm [thread:$0]  %s72, 128, %s2, [#allocation4]
    $region25: #{tpu_custom_call.1} parent=1 // pred_fallthru
      _
    // Predicated region
    $region26: #{tpu_custom_call.1} parent=1 // pred_check
      _
    $region27: #{tpu_custom_call.1} parent=1 // pred_check_branch
      %76 = sbr.rel (0) target = $region29
    $region28: #{tpu_custom_call.1} parent=1 // pred_region
      %s78 = ssub.s32 128, 128
      %79 = vsyncadd [#allocation9], %s78
      %s81 = sshll.u32 [#allocation8], 4
      %s82 = int_to_ptr.vmem [resolvable:$true] %s81
      %84 = dma.vmem_to_hbm [thread:$0]  %s82, 128, %s3, [#allocation9]
    $region29: #{tpu_custom_call.1} parent=1 // pred_fallthru
      _
    // Predicated region
    $region30: #{tpu_custom_call.1} parent=1 // pred_check
      _
    $region31: #{tpu_custom_call.1} parent=1 // pred_check_branch
      %86 = sbr.rel (0) target = $region33
    $region32: #{tpu_custom_call.1} parent=1 // pred_region
      %87 = dma.done [#allocation4], 128
    $region33: #{tpu_custom_call.1} parent=1 // pred_fallthru
      _
    // Predicated region
    $region34: #{tpu_custom_call.1} parent=1 // pred_check
      _
    $region35: #{tpu_custom_call.1} parent=1 // pred_check_branch
      %89 = sbr.rel (0) target = $region37
    $region36: #{tpu_custom_call.1} parent=1 // pred_region
      %90 = dma.done [#allocation9], 128
    $region37: #{tpu_custom_call.1} parent=1 // pred_fallthru
      _
    %91 = vsyncpa [#allocation3], 1
    %92 = vsyncpa [#allocation6], 1
    %93 = vsyncpa [#allocation4], 1
    %94 = vsyncpa [#allocation9], 1

</llo_original>
